<compile_context>
chip_gen: v6e
topology: v6e:2x2x1
jax: 0.10.0
libtpu: 0.0.40
codegen_flags: <defaults>
</compile_context>

<pallas_src>
import numpy as np
import jax
import jax.numpy as jnp
from jax.experimental import pallas as pl
from jax.experimental.pallas import tpu as pltpu


# ------------------------------------------------------------------ helpers

def _pick_batch_tile(n, hw, target_rows=512):
    """Images per grid step: fold batch into the matmul M dim (~<=512 rows),
    but keep >=2 grid steps when possible (2 TensorCores on v7x)."""
    nb = 1
    for d in range(1, n + 1):
        if n % d == 0 and d * hw <= target_rows:
            nb = d
    if n >= 2 and n // nb < 2:
        nb = next(d for d in range(n // 2, 0, -1) if n % d == 0)
    return nb


# ------------------------------------------------------------------ kernels

def _make_conv3x3_kernel(apply_relu, has_residual, nb, h, w, cin, cout):
    """3x3 conv (stride 1, pad 1) + BN affine (+residual) (+ReLU).

    Per grid step: NB images -> a (NB*H*W, 3*Cin) x (3*Cin, Cout) bf16 matmul
    per kh tap (3 MXU pushes), accumulated in f32."""
    rows = nb * h * w

    def kernel(*refs):
        if has_residual:
            x_ref, w_ref, s_ref, b_ref, r_ref, o_ref, xp_ref = refs
        else:
            x_ref, w_ref, s_ref, b_ref, o_ref, xp_ref = refs

        # Zero halo built in VMEM scratch (no host-side jnp.pad HBM round trip).
        xp_ref[...] = jnp.zeros_like(xp_ref)
        xp_ref[:, 1:h + 1, 1:w + 1, :] = x_ref[...].astype(jnp.float32)

        acc = jnp.zeros((rows, cout), jnp.float32)
        for kh in range(3):
            # Merge the three kw taps along the contraction (lane) axis.
            patch = jnp.concatenate(
                [xp_ref[:, kh:kh + h, kw:kw + w, :] for kw in range(3)],
                axis=-1)                                    # (NB,H,W,3*Cin)
            acc = acc + jnp.dot(
                patch.reshape(rows, 3 * cin).astype(jnp.bfloat16),
                w_ref[kh],                                   # (3*Cin, Cout) bf16
                preferred_element_type=jnp.float32)

        out = acc * s_ref[0] + b_ref[0]                      # folded BN, f32
        if has_residual:
            out = out + r_ref[...].reshape(rows, cout).astype(jnp.float32)
        if apply_relu:
            out = jnp.maximum(out, 0.0)
        # TODO(synk): for production stages (Cout >= 128) present a lane-dense
        # output block; with toy Cout=32 the stores are masked (accepted here).
        o_ref[...] = out.reshape(nb, h, w, cout).astype(o_ref.dtype)

    return kernel


def _make_conv1x1_kernel(apply_relu, num_in, rows, cout):
    """Fused (channel-concat +) 1x1 conv + BN affine (+ReLU): one partial
    matmul per input branch, accumulated in f32 (concat never hits HBM)."""

    def kernel(*refs):
        x_refs = refs[:num_in]
        w_refs = refs[num_in:2 * num_in]
        s_ref, b_ref, o_ref = refs[2 * num_in:]
        acc = jnp.zeros((rows, cout), jnp.float32)
        for x_ref, w_ref in zip(x_refs, w_refs):
            cin = x_ref.shape[-1]
            acc = acc + jnp.dot(x_ref[...].reshape(rows, cin), w_ref[...],
                                preferred_element_type=jnp.float32)
        out = acc * s_ref[0] + b_ref[0]
        if apply_relu:
            out = jnp.maximum(out, 0.0)
        o_ref[...] = out.reshape(o_ref.shape).astype(o_ref.dtype)

    return kernel


# -------------------------------------------------------- pallas_call glue

def conv3x3_bn_act(x, w3, scale, bias, residual=None, relu=True):
    """x: (N,H,W,Cin) bf16; w3: (3, 3*Cin, Cout) bf16; scale/bias: (1,Cout) f32."""
    n, h, w, cin = x.shape
    cout = w3.shape[-1]
    nb = _pick_batch_tile(n, h * w)
    has_res = residual is not None

    in_specs = [
        pl.BlockSpec((nb, h, w, cin), lambda i: (i, 0, 0, 0)),
        pl.BlockSpec((3, 3 * cin, cout), lambda i: (0, 0, 0)),
        pl.BlockSpec((1, cout), lambda i: (0, 0)),
        pl.BlockSpec((1, cout), lambda i: (0, 0)),
    ]
    args = [x, w3, scale, bias]
    if has_res:
        in_specs.append(pl.BlockSpec((nb, h, w, cout), lambda i: (i, 0, 0, 0)))
        args.append(residual)

    return pl.pallas_call(
        _make_conv3x3_kernel(relu, has_res, nb, h, w, cin, cout),
        out_shape=jax.ShapeDtypeStruct((n, h, w, cout), x.dtype),
        grid=(n // nb,),
        in_specs=in_specs,
        out_specs=pl.BlockSpec((nb, h, w, cout), lambda i: (i, 0, 0, 0)),
        scratch_shapes=[pltpu.VMEM((nb, h + 2, w + 2, cin), jnp.float32)],
        compiler_params=pltpu.CompilerParams(dimension_semantics=("parallel",)),
    )(*args)


def conv1x1_bn_act(xs, ws, scale, bias, relu=True):
    """xs[i]: (N,H,W,Ci) bf16; ws[i]: (Ci,Cout) bf16; equivalent to
    conv1x1(concat(xs, channel)) with the concat fused into the kernel."""
    n, h, w, _ = xs[0].shape
    cout = ws[0].shape[-1]
    nb = _pick_batch_tile(n, h * w)
    num_in = len(xs)

    in_specs = [pl.BlockSpec((nb, h, w, x.shape[-1]), lambda i: (i, 0, 0, 0))
                for x in xs]
    in_specs += [pl.BlockSpec((wi.shape[0], cout), lambda i: (0, 0)) for wi in ws]
    in_specs += [pl.BlockSpec((1, cout), lambda i: (0, 0)),
                 pl.BlockSpec((1, cout), lambda i: (0, 0))]

    return pl.pallas_call(
        _make_conv1x1_kernel(relu, num_in, nb * h * w, cout),
        out_shape=jax.ShapeDtypeStruct((n, h, w, cout), xs[0].dtype),
        grid=(n // nb,),
        in_specs=in_specs,
        out_specs=pl.BlockSpec((nb, h, w, cout), lambda i: (i, 0, 0, 0)),
        compiler_params=pltpu.CompilerParams(dimension_semantics=("parallel",)),
    )(*xs, *ws, scale, bias)


# -------------------------------------------------- parameter initialization

def _init_conv(key, cout, cin, k):
    # PyTorch layout (Cout, Cin, kh, kw), kaiming-ish scaling, deterministic.
    fan_in = cin * k * k
    return jax.random.normal(key, (cout, cin, k, k), jnp.float32) / np.sqrt(fan_in)


def _init_bn(key, c, eps=1e-5):
    k1, k2, k3, k4 = jax.random.split(key, 4)
    gamma = 1.0 + 0.1 * jax.random.normal(k1, (c,), jnp.float32)
    beta = 0.1 * jax.random.normal(k2, (c,), jnp.float32)
    mean = 0.1 * jax.random.normal(k3, (c,), jnp.float32)
    var = 1.0 + 0.1 * jnp.abs(jax.random.normal(k4, (c,), jnp.float32))
    scale = gamma / jnp.sqrt(var + eps)
    bias = beta - mean * scale
    return scale.reshape(1, c), bias.reshape(1, c)


def _to_k3(w):   # (Cout,Cin,3,3) -> (3, 3*Cin, Cout) bf16; K index = kw*Cin + c
    cout, cin = w.shape[0], w.shape[1]
    return jnp.transpose(w, (2, 3, 1, 0)).reshape(3, 3 * cin, cout).astype(jnp.bfloat16)


def _to_k1(w):   # (Cout,Cin,1,1) -> (Cin,Cout) bf16
    return jnp.transpose(w.reshape(w.shape[0], w.shape[1]), (1, 0)).astype(jnp.bfloat16)


def init_basic_block(key, cin, cout, stride=1):
    assert stride == 1  # TODO(synk): stride>1 needs strided patch extraction in-kernel
    ks = jax.random.split(key, 6)
    p = {
        "conv1_w": _init_conv(ks[0], cout, cin, 3),
        "conv2_w": _init_conv(ks[2], cout, cout, 3),
    }
    p["bn1_s"], p["bn1_b"] = _init_bn(ks[1], cout)
    p["bn2_s"], p["bn2_b"] = _init_bn(ks[3], cout)
    if stride != 1 or cin != cout:
        p["sc_w"] = _init_conv(ks[4], cout, cin, 1)
        p["sc_s"], p["sc_b"] = _init_bn(ks[5], cout)
    return p


def init_tree(key, cin, cout, level=1, stride=1):
    p = {"level": level}
    keys = list(jax.random.split(key, level + 5))
    kit = iter(keys)
    if level == 1:
        p["root_w"] = _init_conv(next(kit), cout, 2 * cout, 1)
        p["root_s"], p["root_b"] = _init_bn(next(kit), cout)
        p["left"] = init_basic_block(next(kit), cin, cout, stride)
        p["right"] = init_basic_block(next(kit), cout, cout, 1)
    else:
        p["root_w"] = _init_conv(next(kit), cout, (level + 2) * cout, 1)
        p["root_s"], p["root_b"] = _init_bn(next(kit), cout)
        for i in reversed(range(1, level)):
            p["level_%d" % i] = init_tree(next(kit), cin, cout, level=i, stride=stride)
        p["prev_root"] = init_basic_block(next(kit), cin, cout, stride)
        p["left"] = init_basic_block(next(kit), cout, cout, 1)
        p["right"] = init_basic_block(next(kit), cout, cout, 1)
    return p


# ------------------------------------------------------------ forward passes

def basic_block_forward(x, p):
    out = conv3x3_bn_act(x, _to_k3(p["conv1_w"]), p["bn1_s"], p["bn1_b"], relu=True)
    if "sc_w" in p:
        sc = conv1x1_bn_act([x], [_to_k1(p["sc_w"])], p["sc_s"], p["sc_b"], relu=False)
    else:
        sc = x
    return conv3x3_bn_act(out, _to_k3(p["conv2_w"]), p["bn2_s"], p["bn2_b"],
                          residual=sc, relu=True)


def tree_forward_nhwc(x, p):
    level = p["level"]
    xs = [basic_block_forward(x, p["prev_root"])] if level > 1 else []
    for i in reversed(range(1, level)):
        x = tree_forward_nhwc(x, p["level_%d" % i])
        xs.append(x)
    x = basic_block_forward(x, p["left"])
    xs.append(x)
    x = basic_block_forward(x, p["right"])
    xs.append(x)
    # Root: torch.cat(xs, dim=1) + conv1x1 + BN + ReLU, with the concat fused
    # into per-branch partial matmuls against row-slices of the root weight.
    w_root = _to_k1(p["root_w"])                  # (sum(Ci), Cout) bf16
    w_splits, off = [], 0
    for t in xs:
        c = t.shape[-1]
        w_splits.append(w_root[off:off + c])
        off += c
    return conv1x1_bn_act(xs, w_splits, p["root_s"], p["root_b"], relu=True)


def tree_apply(x_nchw, p):
    x = jnp.transpose(x_nchw, (0, 2, 3, 1)).astype(jnp.bfloat16)   # NCHW -> NHWC, bf16
    out = tree_forward_nhwc(x, p)
    return jnp.transpose(out.astype(jnp.float32), (0, 3, 1, 2))    # NHWC -> NCHW, f32


# -------------------------------------------------------- pure-JAX reference
# Mirrors the kernel's dtype pipeline exactly (bf16 activations/weights, f32
# accumulation + affine) so the comparison checks kernel structure, not bf16.

def _ref_conv_bn(x, w_torch, scale, bias, relu, residual=None):
    k = w_torch.shape[-1]
    pad = (k - 1) // 2
    w_hwio = jnp.transpose(w_torch, (2, 3, 1, 0)).astype(jnp.bfloat16)
    out = jax.lax.conv_general_dilated(
        x.astype(jnp.bfloat16), w_hwio, (1, 1), [(pad, pad), (pad, pad)],
        dimension_numbers=("NHWC", "HWIO", "NHWC"),
        preferred_element_type=jnp.float32)
    out = out * scale.reshape(1, 1, 1, -1) + bias.reshape(1, 1, 1, -1)
    if residual is not None:
        out = out + residual.astype(jnp.float32)
    if relu:
        out = jnp.maximum(out, 0.0)
    return out.astype(jnp.bfloat16)


def _ref_block(x, p):
    out = _ref_conv_bn(x, p["conv1_w"], p["bn1_s"], p["bn1_b"], True)
    sc = _ref_conv_bn(x, p["sc_w"], p["sc_s"], p["sc_b"], False) if "sc_w" in p else x
    return _ref_conv_bn(out, p["conv2_w"], p["bn2_s"], p["bn2_b"], True, residual=sc)


def _ref_tree(x, p):
    level = p["level"]
    xs = [_ref_block(x, p["prev_root"])] if level > 1 else []
    for i in reversed(range(1, level)):
        x = _ref_tree(x, p["level_%d" % i])
        xs.append(x)
    x = _ref_block(x, p["left"])
    xs.append(x)
    x = _ref_block(x, p["right"])
    xs.append(x)
    cat = jnp.concatenate(xs, axis=-1)
    return _ref_conv_bn(cat, p["root_w"], p["root_s"], p["root_b"], True)


def tree_apply_ref(x_nchw, p):
    x = jnp.transpose(x_nchw, (0, 2, 3, 1)).astype(jnp.bfloat16)
    out = _ref_tree(x, p)
    return jnp.transpose(out.astype(jnp.float32), (0, 3, 1, 2))


# -------------------------------------------------------------------- main

if __name__ == "__main__":
    key = jax.random.PRNGKey(0)
    kx, kp = jax.random.split(key)

    N, Cin, Cout, H, W = 2, 16, 32, 8, 8          # small shapes, NCHW input
    x = jax.random.normal(kx, (N, Cin, H, W), jnp.float32)
    params = init_tree(kp, Cin, Cout, level=1, stride=1)

    out = jax.block_until_ready(tree_apply(x, params))
    assert out.shape == (N, Cout, H, W), out.shape

    ref = jax.block_until_ready(tree_apply_ref(x, params))
    # bf16 activation pipeline on both sides -> small ulp-level differences only.
    np.testing.assert_allclose(np.asarray(out), np.asarray(ref), rtol=2e-2, atol=2e-2)

    print("KERNEL_OK")
</pallas_src>

<mosaic_0001>
module attributes {stable_mosaic.version = 11 : i64} {
  func.func @kernel(%arg0: i32, %arg1: memref<1x8x8x16xbf16, #tpu.memory_space<vmem>>, %arg2: memref<3x48x32xbf16, #tpu.memory_space<vmem>>, %arg3: memref<1x32xf32, #tpu.memory_space<vmem>>, %arg4: memref<1x32xf32, #tpu.memory_space<vmem>>, %arg5: memref<1x8x8x32xbf16, #tpu.memory_space<vmem>>, %arg6: memref<1x10x10x16xf32, #tpu.memory_space<vmem>>) attributes {dimension_semantics = [#tpu.dimension_semantics<parallel>], iteration_bounds = array<i64: 2>, scalar_prefetch = 0 : i64, scratch_operands = 1 : i64, tpu.core_type = #tpu.core_type<tc>, window_params = [{transform_indices = @transform_0, window_bounds = array<i64: 1, 8, 8, 16>}, {pipeline_mode = #tpu.pipeline_mode<synchronous>, transform_indices = @transform_1, window_bounds = array<i64: 3, 48, 32>}, {pipeline_mode = #tpu.pipeline_mode<synchronous>, transform_indices = @transform_2, window_bounds = array<i64: 1, 32>}, {pipeline_mode = #tpu.pipeline_mode<synchronous>, transform_indices = @transform_3, window_bounds = array<i64: 1, 32>}, {transform_indices = @transform_4, window_bounds = array<i64: 1, 8, 8, 32>}]} {
    %cst = arith.constant 0.000000e+00 : f32
    %0 = vector.broadcast %cst : f32 to vector<1x10x10x16xf32>
    %c0 = arith.constant 0 : index
    %c0_0 = arith.constant 0 : index
    %c0_1 = arith.constant 0 : index
    %c0_2 = arith.constant 0 : index
    %1 = vector.load %arg6[%c0, %c0_0, %c0_1, %c0_2] : memref<1x10x10x16xf32, #tpu.memory_space<vmem>>, vector<1x10x10x16xf32>
    tpu.vector_store %arg6[%c0, %c0_0, %c0_1, %c0_2], %0 {strides = array<i32>} : memref<1x10x10x16xf32, #tpu.memory_space<vmem>>, vector<1x10x10x16xf32>,
    %c0_3 = arith.constant 0 : index
    %c0_4 = arith.constant 0 : index
    %c0_5 = arith.constant 0 : index
    %c0_6 = arith.constant 0 : index
    %2 = vector.load %arg1[%c0_3, %c0_4, %c0_5, %c0_6] : memref<1x8x8x16xbf16, #tpu.memory_space<vmem>>, vector<1x8x8x16xbf16>
    %3 = arith.extf %2 : vector<1x8x8x16xbf16> to vector<1x8x8x16xf32>
    %c0_7 = arith.constant 0 : index
    %c1 = arith.constant 1 : index
    %c1_8 = arith.constant 1 : index
    %c0_9 = arith.constant 0 : index
    %4 = vector.load %arg6[%c0_7, %c1, %c1_8, %c0_9] : memref<1x10x10x16xf32, #tpu.memory_space<vmem>>, vector<1x8x8x16xf32>
    tpu.vector_store %arg6[%c0_7, %c1, %c1_8, %c0_9], %3 {strides = array<i32>} : memref<1x10x10x16xf32, #tpu.memory_space<vmem>>, vector<1x8x8x16xf32>,
    %cst_10 = arith.constant 0.000000e+00 : f32
    %5 = vector.broadcast %cst_10 : f32 to vector<64x32xf32>
    %c0_11 = arith.constant 0 : index
    %c0_12 = arith.constant 0 : index
    %c0_13 = arith.constant 0 : index
    %c0_14 = arith.constant 0 : index
    %6 = vector.load %arg6[%c0_11, %c0_12, %c0_13, %c0_14] : memref<1x10x10x16xf32, #tpu.memory_space<vmem>>, vector<1x8x8x16xf32>
    %c0_15 = arith.constant 0 : index
    %c0_16 = arith.constant 0 : index
    %c1_17 = arith.constant 1 : index
    %c0_18 = arith.constant 0 : index
    %7 = vector.load %arg6[%c0_15, %c0_16, %c1_17, %c0_18] : memref<1x10x10x16xf32, #tpu.memory_space<vmem>>, vector<1x8x8x16xf32>
    %c0_19 = arith.constant 0 : index
    %c0_20 = arith.constant 0 : index
    %c2 = arith.constant 2 : index
    %c0_21 = arith.constant 0 : index
    %8 = vector.load %arg6[%c0_19, %c0_20, %c2, %c0_21] : memref<1x10x10x16xf32, #tpu.memory_space<vmem>>, vector<1x8x8x16xf32>
    %9 = tpu.concatenate %6, %7, %8 in 3 : vector<1x8x8x16xf32>, vector<1x8x8x16xf32>, vector<1x8x8x16xf32> -> vector<1x8x8x48xf32>
    %10 = vector.shape_cast %9 : vector<1x8x8x48xf32> to vector<64x48xf32>
    %11 = arith.truncf %10 : vector<64x48xf32> to vector<64x48xbf16>
    %c0_22 = arith.constant 0 : index
    %c0_23 = arith.constant 0 : index
    %c0_24 = arith.constant 0 : index
    %12 = vector.load %arg2[%c0_22, %c0_23, %c0_24] : memref<3x48x32xbf16, #tpu.memory_space<vmem>>, vector<1x48x32xbf16>
    %13 = vector.shape_cast %12 : vector<1x48x32xbf16> to vector<48x32xbf16>
    %cst_25 = arith.constant dense<0.000000e+00> : vector<64x32xf32>
    %14 = tpu.matmul %11, %13, %cst_25 {dimension_numbers = #tpu.dot_dimension_numbers<[1], [0], [0], [1], [0, 0, 1, 1], [], []>} : vector<64x48xbf16>, vector<48x32xbf16>, vector<64x32xf32> -> vector<64x32xf32>
    %15 = arith.addf %5, %14 : vector<64x32xf32>
    %c0_26 = arith.constant 0 : index
    %c1_27 = arith.constant 1 : index
    %c0_28 = arith.constant 0 : index
    %c0_29 = arith.constant 0 : index
    %16 = vector.load %arg6[%c0_26, %c1_27, %c0_28, %c0_29] : memref<1x10x10x16xf32, #tpu.memory_space<vmem>>, vector<1x8x8x16xf32>
    %c0_30 = arith.constant 0 : index
    %c1_31 = arith.constant 1 : index
    %c1_32 = arith.constant 1 : index
    %c0_33 = arith.constant 0 : index
    %17 = vector.load %arg6[%c0_30, %c1_31, %c1_32, %c0_33] : memref<1x10x10x16xf32, #tpu.memory_space<vmem>>, vector<1x8x8x16xf32>
    %c0_34 = arith.constant 0 : index
    %c1_35 = arith.constant 1 : index
    %c2_36 = arith.constant 2 : index
    %c0_37 = arith.constant 0 : index
    %18 = vector.load %arg6[%c0_34, %c1_35, %c2_36, %c0_37] : memref<1x10x10x16xf32, #tpu.memory_space<vmem>>, vector<1x8x8x16xf32>
    %19 = tpu.concatenate %16, %17, %18 in 3 : vector<1x8x8x16xf32>, vector<1x8x8x16xf32>, vector<1x8x8x16xf32> -> vector<1x8x8x48xf32>
    %20 = vector.shape_cast %19 : vector<1x8x8x48xf32> to vector<64x48xf32>
    %21 = arith.truncf %20 : vector<64x48xf32> to vector<64x48xbf16>
    %c1_38 = arith.constant 1 : index
    %c0_39 = arith.constant 0 : index
    %c0_40 = arith.constant 0 : index
    %22 = vector.load %arg2[%c1_38, %c0_39, %c0_40] : memref<3x48x32xbf16, #tpu.memory_space<vmem>>, vector<1x48x32xbf16>
    %23 = vector.shape_cast %22 : vector<1x48x32xbf16> to vector<48x32xbf16>
    %cst_41 = arith.constant dense<0.000000e+00> : vector<64x32xf32>
    %24 = tpu.matmul %21, %23, %cst_41 {dimension_numbers = #tpu.dot_dimension_numbers<[1], [0], [0], [1], [0, 0, 1, 1], [], []>} : vector<64x48xbf16>, vector<48x32xbf16>, vector<64x32xf32> -> vector<64x32xf32>
    %25 = arith.addf %15, %24 : vector<64x32xf32>
    %c0_42 = arith.constant 0 : index
    %c2_43 = arith.constant 2 : index
    %c0_44 = arith.constant 0 : index
    %c0_45 = arith.constant 0 : index
    %26 = vector.load %arg6[%c0_42, %c2_43, %c0_44, %c0_45] : memref<1x10x10x16xf32, #tpu.memory_space<vmem>>, vector<1x8x8x16xf32>
    %c0_46 = arith.constant 0 : index
    %c2_47 = arith.constant 2 : index
    %c1_48 = arith.constant 1 : index
    %c0_49 = arith.constant 0 : index
    %27 = vector.load %arg6[%c0_46, %c2_47, %c1_48, %c0_49] : memref<1x10x10x16xf32, #tpu.memory_space<vmem>>, vector<1x8x8x16xf32>
    %c0_50 = arith.constant 0 : index
    %c2_51 = arith.constant 2 : index
    %c2_52 = arith.constant 2 : index
    %c0_53 = arith.constant 0 : index
    %28 = vector.load %arg6[%c0_50, %c2_51, %c2_52, %c0_53] : memref<1x10x10x16xf32, #tpu.memory_space<vmem>>, vector<1x8x8x16xf32>
    %29 = tpu.concatenate %26, %27, %28 in 3 : vector<1x8x8x16xf32>, vector<1x8x8x16xf32>, vector<1x8x8x16xf32> -> vector<1x8x8x48xf32>
    %30 = vector.shape_cast %29 : vector<1x8x8x48xf32> to vector<64x48xf32>
    %31 = arith.truncf %30 : vector<64x48xf32> to vector<64x48xbf16>
    %c2_54 = arith.constant 2 : index
    %c0_55 = arith.constant 0 : index
    %c0_56 = arith.constant 0 : index
    %32 = vector.load %arg2[%c2_54, %c0_55, %c0_56] : memref<3x48x32xbf16, #tpu.memory_space<vmem>>, vector<1x48x32xbf16>
    %33 = vector.shape_cast %32 : vector<1x48x32xbf16> to vector<48x32xbf16>
    %cst_57 = arith.constant dense<0.000000e+00> : vector<64x32xf32>
    %34 = tpu.matmul %31, %33, %cst_57 {dimension_numbers = #tpu.dot_dimension_numbers<[1], [0], [0], [1], [0, 0, 1, 1], [], []>} : vector<64x48xbf16>, vector<48x32xbf16>, vector<64x32xf32> -> vector<64x32xf32>
    %35 = arith.addf %25, %34 : vector<64x32xf32>
    %c0_58 = arith.constant 0 : index
    %c0_59 = arith.constant 0 : index
    %36 = vector.load %arg3[%c0_58, %c0_59] : memref<1x32xf32, #tpu.memory_space<vmem>>, vector<1x32xf32>
    %37 = vector.shape_cast %36 : vector<1x32xf32> to vector<32xf32>
    %38 = vector.shape_cast %37 : vector<32xf32> to vector<1x32xf32>
    %39 = vector.broadcast %38 : vector<1x32xf32> to vector<64x32xf32>
    %40 = arith.mulf %35, %39 : vector<64x32xf32>
    %c0_60 = arith.constant 0 : index
    %c0_61 = arith.constant 0 : index
    %41 = vector.load %arg4[%c0_60, %c0_61] : memref<1x32xf32, #tpu.memory_space<vmem>>, vector<1x32xf32>
    %42 = vector.shape_cast %41 : vector<1x32xf32> to vector<32xf32>
    %43 = vector.shape_cast %42 : vector<32xf32> to vector<1x32xf32>
    %44 = vector.broadcast %43 : vector<1x32xf32> to vector<64x32xf32>
    %45 = arith.addf %40, %44 : vector<64x32xf32>
    %cst_62 = arith.constant 0.000000e+00 : f32
    %46 = vector.broadcast %cst_62 : f32 to vector<64x32xf32>
    %47 = arith.maximumf %45, %46 : vector<64x32xf32>
    %48 = vector.shape_cast %47 : vector<64x32xf32> to vector<1x8x8x32xf32>
    %49 = arith.truncf %48 : vector<1x8x8x32xf32> to vector<1x8x8x32xbf16>
    %c0_63 = arith.constant 0 : index
    %c0_64 = arith.constant 0 : index
    %c0_65 = arith.constant 0 : index
    %c0_66 = arith.constant 0 : index
    %50 = vector.load %arg5[%c0_63, %c0_64, %c0_65, %c0_66] : memref<1x8x8x32xbf16, #tpu.memory_space<vmem>>, vector<1x8x8x32xbf16>
    tpu.vector_store %arg5[%c0_63, %c0_64, %c0_65, %c0_66], %49 {strides = array<i32>} : memref<1x8x8x32xbf16, #tpu.memory_space<vmem>>, vector<1x8x8x32xbf16>,
    return
  }
  func.func @transform_0(%arg0: i32) -> (i32, i32, i32, i32) {
    %c0_i32 = arith.constant 0 : i32
    %c0_i32_0 = arith.constant 0 : i32
    %c0_i32_1 = arith.constant 0 : i32
    %c0_i32_2 = arith.constant 0 : i32
    return %arg0, %c0_i32, %c0_i32_0, %c0_i32_1 : i32, i32, i32, i32
  }
  func.func @transform_1(%arg0: i32) -> (i32, i32, i32) {
    %c0_i32 = arith.constant 0 : i32
    %c0_i32_0 = arith.constant 0 : i32
    %c0_i32_1 = arith.constant 0 : i32
    %c0_i32_2 = arith.constant 0 : i32
    return %c0_i32, %c0_i32_0, %c0_i32_1 : i32, i32, i32
  }
  func.func @transform_2(%arg0: i32) -> (i32, i32) {
    %c0_i32 = arith.constant 0 : i32
    %c0_i32_0 = arith.constant 0 : i32
    %c0_i32_1 = arith.constant 0 : i32
    return %c0_i32, %c0_i32_0 : i32, i32
  }
  func.func @transform_3(%arg0: i32) -> (i32, i32) {
    %c0_i32 = arith.constant 0 : i32
    %c0_i32_0 = arith.constant 0 : i32
    %c0_i32_1 = arith.constant 0 : i32
    return %c0_i32, %c0_i32_0 : i32, i32
  }
  func.func @transform_4(%arg0: i32) -> (i32, i32, i32, i32) {
    %c0_i32 = arith.constant 0 : i32
    %c0_i32_0 = arith.constant 0 : i32
    %c0_i32_1 = arith.constant 0 : i32
    %c0_i32_2 = arith.constant 0 : i32
    return %arg0, %c0_i32, %c0_i32_0, %c0_i32_1 : i32, i32, i32, i32
  }
}

</mosaic_0001>

<llo_original>
// kernel: tpu_custom_call.1
$region0: #{tpu_custom_call.1}
  #allocation0 [shape = 'u32[]', space=smem, size = 0x4, offset = 0x4, fixed_abs, tag = 'smem constant byte address 0x4 - core index']
  #allocation1 [shape = 'u32[144,128]{1,0:T(1,128)}', space=vmem, size = 0x12000, scoped, tag = 'internal scratch']
  #allocation2 [shape = 'f32[1,10,10,16]{3,2,1,0:T(8,128)}', space=vmem, size = 0x14000, scoped, tag = 'scratch operand']
  %s0 = inlined_call_operand.vmem [shape: bf16[2,8,8,16], index: 0, kind: input, shape index: {}]
  %s1 = inlined_call_operand.vmem [shape: bf16[3,48,32], index: 1, kind: input, shape index: {}]
  %s2 = inlined_call_operand.vmem [shape: f32[1,32], index: 2, kind: input, shape index: {}]
  %s3 = inlined_call_operand.vmem [shape: f32[1,32], index: 3, kind: input, shape index: {}]
  %s4 = inlined_call_operand.hbm [shape: bf16[2,8,8,32], index: 4, kind: output, shape index: {}]
  %s5 = sld [smem:[#allocation0]]
  $region49: #{tpu_custom_call.1} parent=0
    _
  %s7 = ssub.s32 1, %s5
  %s8 = scalar_select 0, %s7, %s5
  $region1: #{tpu_custom_call.1} parent=0
    #allocation3 [shape = 'u8[32768]{0}', space=vmem, size = 0x8000, scoped, tag = 'output window, operand 0']
    #allocation4 [shape = 's32[2]{0}', space=sflag, size = 0x8, scoped, tag = 'scoped memory for tpu_custom_call.1']
    %9 = vsyncpa [#allocation4], 0
    %s10 = scalar_lea.sflag [#allocation4], 1
    %11 = vsyncpa %s10, 0
    loop: start=0, step=1, limit=4
    $region2: #{tpu_custom_call.1} parent=1 // loop_pre_header
      _
    $region3: #{tpu_custom_call.1} parent=1 // loop_header
      %s13 = sphi 0, %s17
      %p14 = scmp.ge.s32.totalorder %s13, 4
      %s23 = sphi 0, %s25
      %s26 = sphi 0, %s23
      %s27 = sphi 0, %s26
      %s43 = sphi 0, %s27
      %s47 = sphi 0, %s47
      %s49 = sphi 0, %s47
      %s50 = sphi 0, %s49
      %s64 = sphi 0, %s50
      %s68 = sphi 0, %s68
      %s70 = sphi 0, %s68
      %s71 = sphi 0, %s70
      %s85 = sphi 0, %s71
      %s89 = sphi 0, %s89
      %s91 = sphi 0, %s89
      %s92 = sphi 0, %s91
      %s106 = sphi 0, %s92
      %s112 = sphi 0, %s114
      %s115 = sphi 0, %s112
      %s116 = sphi 0, %s115
      %s132 = sphi 0, %s116
    $region4: #{tpu_custom_call.1} parent=1 // loop_header_branch
      %16 = sbr.rel (%p14) target = $region8
    $region5: #{tpu_custom_call.1} parent=1 // loop_body
      %s18 = ssub.s32 %s13, 1
      %s19 = ssub.s32 %s13, 2
      %s20 = sadd.s32 %s13, 1
      %s21 = ssub.s32 %s13, %s20
      %p22 = scmp.eq.s32.totalorder %s21, 0
      %s24 = sadd.s32 %s23, 1
      %s25 = scalar_select %p22, %s23, %s24
      %p28 = pneg %p22
      %p29 = scmp.eq.s32.totalorder %s13, 1
      %p30 = por %p28, %p29
      %p31 = scmp.ne.s32.totalorder %s23, %s26
      %p32 = scmp.eq.s32.totalorder %s13, 0
      %p33 = por %p31, %p32
      %p34 = scmp.ne.s32.totalorder %s23, %s26
      %p35 = scmp.eq.s32.totalorder %s18, 1
      %p36 = por %p34, %p35
      %p37 = scmp.ne.s32.totalorder %s26, %s27
      %p38 = scmp.eq.s32.totalorder %s18, 0
      %p39 = por %p37, %p38
      %p40 = scmp.ne.s32.totalorder %s26, %s27
      %p41 = scmp.eq.s32.totalorder %s19, 1
      %p42 = por %p40, %p41
      %p44 = scmp.ne.s32.totalorder %s27, %s43
      %p45 = scmp.eq.s32.totalorder %s19, 0
      %p46 = por %p44, %p45
      %s48 = sadd.s32 %s47, 1
      %p51 = scmp.eq.s32.totalorder %s13, 1
      %p52 = scmp.ne.s32.totalorder %s47, %s49
      %p53 = scmp.eq.s32.totalorder %s13, 0
      %p54 = por %p52, %p53
      %p55 = scmp.ne.s32.totalorder %s47, %s49
      %p56 = scmp.eq.s32.totalorder %s18, 1
      %p57 = por %p55, %p56
      %p58 = scmp.ne.s32.totalorder %s49, %s50
      %p59 = scmp.eq.s32.totalorder %s18, 0
      %p60 = por %p58, %p59
      %p61 = scmp.ne.s32.totalorder %s49, %s50
      %p62 = scmp.eq.s32.totalorder %s19, 1
      %p63 = por %p61, %p62
      %p65 = scmp.ne.s32.totalorder %s50, %s64
      %p66 = scmp.eq.s32.totalorder %s19, 0
      %p67 = por %p65, %p66
      %s69 = sadd.s32 %s68, 1
      %p72 = scmp.eq.s32.totalorder %s13, 1
      %p73 = scmp.ne.s32.totalorder %s68, %s70
      %p74 = scmp.eq.s32.totalorder %s13, 0
      %p75 = por %p73, %p74
      %p76 = scmp.ne.s32.totalorder %s68, %s70
      %p77 = scmp.eq.s32.totalorder %s18, 1
      %p78 = por %p76, %p77
      %p79 = scmp.ne.s32.totalorder %s70, %s71
      %p80 = scmp.eq.s32.totalorder %s18, 0
      %p81 = por %p79, %p80
      %p82 = scmp.ne.s32.totalorder %s70, %s71
      %p83 = scmp.eq.s32.totalorder %s19, 1
      %p84 = por %p82, %p83
      %p86 = scmp.ne.s32.totalorder %s71, %s85
      %p87 = scmp.eq.s32.totalorder %s19, 0
      %p88 = por %p86, %p87
      %s90 = sadd.s32 %s89, 1
      %p93 = scmp.eq.s32.totalorder %s13, 1
      %p94 = scmp.ne.s32.totalorder %s89, %s91
      %p95 = scmp.eq.s32.totalorder %s13, 0
      %p96 = por %p94, %p95
      %p97 = scmp.ne.s32.totalorder %s89, %s91
      %p98 = scmp.eq.s32.totalorder %s18, 1
      %p99 = por %p97, %p98
      %p100 = scmp.ne.s32.totalorder %s91, %s92
      %p101 = scmp.eq.s32.totalorder %s18, 0
      %p102 = por %p100, %p101
      %p103 = scmp.ne.s32.totalorder %s91, %s92
      %p104 = scmp.eq.s32.totalorder %s19, 1
      %p105 = por %p103, %p104
      %p107 = scmp.ne.s32.totalorder %s92, %s106
      %p108 = scmp.eq.s32.totalorder %s19, 0
      %p109 = por %p107, %p108
      %s110 = ssub.s32 %s13, %s20
      %p111 = scmp.eq.s32.totalorder %s110, 0
      %s113 = sadd.s32 %s112, 1
      %s114 = scalar_select %p111, %s112, %s113
      %p117 = pneg %p111
      %p118 = scmp.eq.s32.totalorder %s13, 1
      %p119 = por %p117, %p118
      %p120 = scmp.ne.s32.totalorder %s112, %s115
      %p121 = scmp.eq.s32.totalorder %s13, 0
      %p122 = por %p120, %p121
      %p123 = scmp.ne.s32.totalorder %s112, %s115
      %p124 = scmp.eq.s32.totalorder %s18, 1
      %p125 = por %p123, %p124
      %p126 = scmp.ne.s32.totalorder %s115, %s116
      %p127 = scmp.eq.s32.totalorder %s18, 0
      %p128 = por %p126, %p127
      %p129 = scmp.ne.s32.totalorder %s115, %s116
      %p130 = scmp.eq.s32.totalorder %s19, 1
      %p131 = por %p129, %p130
      %p133 = scmp.ne.s32.totalorder %s116, %s132
      %p134 = scmp.eq.s32.totalorder %s19, 0
      %p135 = por %p133, %p134
      %p136 = scmp.le.s32.totalorder 1, %s13
      %p137 = scmp.lt.s32.totalorder %s13, 3
      %p138 = pnand %p136, %p137
      %p139 = pneg %p138
      // Predicated region
      $region9: #{tpu_custom_call.1} parent=5 // pred_check
        _
      $region10: #{tpu_custom_call.1} parent=5 // pred_check_branch
        %141 = sbr.rel (%p138) target = $region12
      $region11: #{tpu_custom_call.1} parent=5 // pred_region
        %s142 = ssub.s32 %s13, 1
        // Predicated region
        $region13: #{tpu_custom_call.1} parent=11 // pred_check
          %p143 = pneg %p60
        $region14: #{tpu_custom_call.1} parent=11 // pred_check_branch
          %145 = sbr.rel (%p143) target = $region16
        $region15: #{tpu_custom_call.1} parent=11 // pred_region
          _
        $region16: #{tpu_custom_call.1} parent=11 // pred_fallthru
          _
        // Predicated region
        $region17: #{tpu_custom_call.1} parent=11 // pred_check
          %p146 = pneg %p81
        $region18: #{tpu_custom_call.1} parent=11 // pred_check_branch
          %148 = sbr.rel (%p146) target = $region20
        $region19: #{tpu_custom_call.1} parent=11 // pred_region
          _
        $region20: #{tpu_custom_call.1} parent=11 // pred_fallthru
          _
        // Predicated region
        $region21: #{tpu_custom_call.1} parent=11 // pred_check
          %p149 = pneg %p102
        $region22: #{tpu_custom_call.1} parent=11 // pred_check_branch
          %151 = sbr.rel (%p149) target = $region24
        $region23: #{tpu_custom_call.1} parent=11 // pred_region
          _
        $region24: #{tpu_custom_call.1} parent=11 // pred_fallthru
          _
      $region12: #{tpu_custom_call.1} parent=5 // pred_fallthru
        _
      %p152 = scmp.lt.s32.totalorder %s13, 2
      // Predicated region
      $region25: #{tpu_custom_call.1} parent=5 // pred_check
        %p153 = pneg %p152
      $region26: #{tpu_custom_call.1} parent=5 // pred_check_branch
        %155 = sbr.rel (%p153) target = $region28
      $region27: #{tpu_custom_call.1} parent=5 // pred_region
        // Predicated region
        $region29: #{tpu_custom_call.1} parent=27 // pred_check
          %p156 = pneg %p33
        $region30: #{tpu_custom_call.1} parent=27 // pred_check_branch
          %158 = sbr.rel (%p156) target = $region32
        $region31: #{tpu_custom_call.1} parent=27 // pred_region
          %p159 = scmp.lt.s32.totalorder %s13, 1
          %s160 = scalar_select %p159, %s13, 1
          %s161 = smul.addr %s160, 8
          %s162 = smul.addr %s161, 4
          %s163 = scalar_lea.vmem %s0, %s162
        $region32: #{tpu_custom_call.1} parent=27 // pred_fallthru
          _
      $region28: #{tpu_custom_call.1} parent=5 // pred_fallthru
        _
      %p164 = scmp.le.s32.totalorder 1, %s13
      %p165 = scmp.lt.s32.totalorder %s13, 3
      %p166 = pnand %p164, %p165
      %p167 = pneg %p166
      // Predicated region
      $region33: #{tpu_custom_call.1} parent=5 // pred_check
        _
      $region34: #{tpu_custom_call.1} parent=5 // pred_check_branch
        %169 = sbr.rel (%p166) target = $region36
      $region35: #{tpu_custom_call.1} parent=5 // pred_region
        %s170 = ssub.s32 %s13, 1
        %p171 = scmp.lt.s32.totalorder %s18, 1
        %s172 = scalar_select %p171, %s18, 1
        %s173 = smul.addr %s172, 8
        %s174 = smul.addr %s173, 4
        %s175 = scalar_lea.vmem %s0, %s174
        %p176 = pneg %p39
        %p177 = pneg %p36
        %p178 = pneg %p60
        %p179 = pneg %p57
        %p180 = pneg %p81
        %p181 = pneg %p78
        %p182 = pneg %p102
        %p183 = pneg %p99
        %p184 = pneg %p128
        %p185 = pneg %p125
        %s186 = sand.u32 %s115, 1
        %s187 = scalar_lea.sflag [#allocation4], %s186
        %s188 = sand.u32 %s115, 1
        %s189 = smul.addr %s188, 32
        %s190 = scalar_lea.vmem [#allocation3], %s189
        %p191 = scmp.lt.s32.totalorder %s18, 1
        %s192 = scalar_select %p191, %s18, 1
        %s193 = smul.addr %s192, 8
        %s194 = smul.addr %s193, 4
        %s195 = scalar_lea.vmem %s0, %s194
        %vm197 = vcmask 130048
        %198 = vst.msk [vmem:[#allocation2] sm:$0xff] %vm197, 0.0
        %vm199 = vcmask 123904
        %200 = vst.msk [vmem:[#allocation2 + $0x8] sm:$0x3] %vm199, 0.0
        %201 = vst.msk [vmem:[#allocation2 + $0x10] sm:$0xff] %vm197, 0.0
        %202 = vst.msk [vmem:[#allocation2 + $0x18] sm:$0x3] %vm199, 0.0
        %203 = vst.msk [vmem:[#allocation2 + $0x20] sm:$0xff] %vm197, 0.0
        %204 = vst.msk [vmem:[#allocation2 + $0x28] sm:$0x3] %vm199, 0.0
        %205 = vst.msk [vmem:[#allocation2 + $0x30] sm:$0xff] %vm197, 0.0
        %206 = vst.msk [vmem:[#allocation2 + $0x38] sm:$0x3] %vm199, 0.0
        %207 = vst.msk [vmem:[#allocation2 + $0x40] sm:$0xff] %vm197, 0.0
        %208 = vst.msk [vmem:[#allocation2 + $0x48] sm:$0x3] %vm199, 0.0
        %209 = vst.msk [vmem:[#allocation2 + $0x50] sm:$0xff] %vm197, 0.0
        %210 = vst.msk [vmem:[#allocation2 + $0x58] sm:$0x3] %vm199, 0.0
        %211 = vst.msk [vmem:[#allocation2 + $0x60] sm:$0xff] %vm197, 0.0
        %212 = vst.msk [vmem:[#allocation2 + $0x68] sm:$0x3] %vm199, 0.0
        %213 = vst.msk [vmem:[#allocation2 + $0x70] sm:$0xff] %vm197, 0.0
        %214 = vst.msk [vmem:[#allocation2 + $0x78] sm:$0x3] %vm199, 0.0
        %215 = vst.msk [vmem:[#allocation2 + $0x80] sm:$0xff] %vm197, 0.0
        %216 = vst.msk [vmem:[#allocation2 + $0x88] sm:$0x3] %vm199, 0.0
        %217 = vst.msk [vmem:[#allocation2 + $0x90] sm:$0xff] %vm197, 0.0
        %218 = vst.msk [vmem:[#allocation2 + $0x98] sm:$0x3] %vm199, 0.0
        %v219 = vld [vmem:[%s195] sm:$0xf]
        %v220 = vld [vmem:[%s195 + $0x4] sm:$0xf]
        %v221 = vld [vmem:[%s195 + $0x8] sm:$0xf]
        %v222 = vld [vmem:[%s195 + $0xc] sm:$0xf]
        %v223 = vld [vmem:[%s195 + $0x10] sm:$0xf]
        %v224 = vld [vmem:[%s195 + $0x14] sm:$0xf]
        %v225 = vld [vmem:[%s195 + $0x18] sm:$0xf]
        %v226 = vld [vmem:[%s195 + $0x1c] sm:$0xf]
        %v227 = vunpack.c.l.bf16 %v219
        %v228 = vunpack.c.l.bf16 %v220
        %v229 = vunpack.c.l.bf16 %v221
        %v230 = vunpack.c.l.bf16 %v222
        %v231 = vunpack.c.l.bf16 %v223
        %v232 = vunpack.c.l.bf16 %v224
        %v233 = vunpack.c.l.bf16 %v225
        %v234 = vunpack.c.l.bf16 %v226
        %s235 = scalar_lea.vmem [#allocation2], 16
        %236 = vst.msk [vmem:[%s235 + $0x1] sm:$0xff] %vm197, %v227
        %237 = vst.msk [vmem:[%s235 + $0x11] sm:$0xff] %vm197, %v228
        %238 = vst.msk [vmem:[%s235 + $0x21] sm:$0xff] %vm197, %v229
        %239 = vst.msk [vmem:[%s235 + $0x31] sm:$0xff] %vm197, %v230
        %240 = vst.msk [vmem:[%s235 + $0x41] sm:$0xff] %vm197, %v231
        %241 = vst.msk [vmem:[%s235 + $0x51] sm:$0xff] %vm197, %v232
        %242 = vst.msk [vmem:[%s235 + $0x61] sm:$0xff] %vm197, %v233
        %243 = vst.msk [vmem:[%s235 + $0x71] sm:$0xff] %vm197, %v234
        %v244 = vld [vmem:[#allocation2] sm:$0xff]
        %v245 = vld [vmem:[#allocation2 + $0x10] sm:$0xff]
        %v246 = vld [vmem:[#allocation2 + $0x20] sm:$0xff]
        %v247 = vld [vmem:[#allocation2 + $0x30] sm:$0xff]
        %v248 = vld [vmem:[#allocation2 + $0x40] sm:$0xff]
        %v249 = vld [vmem:[#allocation2 + $0x50] sm:$0xff]
        %v250 = vld [vmem:[#allocation2 + $0x60] sm:$0xff]
        %v251 = vld [vmem:[#allocation2 + $0x70] sm:$0xff]
        %v252 = vld [vmem:[#allocation2 + $0x1] sm:$0xff]
        %v253 = vld [vmem:[#allocation2 + $0x11] sm:$0xff]
        %v254 = vld [vmem:[#allocation2 + $0x21] sm:$0xff]
        %v255 = vld [vmem:[#allocation2 + $0x31] sm:$0xff]
        %v256 = vld [vmem:[#allocation2 + $0x41] sm:$0xff]
        %v257 = vld [vmem:[#allocation2 + $0x51] sm:$0xff]
        %v258 = vld [vmem:[#allocation2 + $0x61] sm:$0xff]
        %v259 = vld [vmem:[#allocation2 + $0x71] sm:$0xff]
        %v260 = vld [vmem:[#allocation2 + $0x2] sm:$0xff]
        %v261 = vld [vmem:[#allocation2 + $0x12] sm:$0xff]
        %v262 = vld [vmem:[#allocation2 + $0x22] sm:$0xff]
        %v263 = vld [vmem:[#allocation2 + $0x32] sm:$0xff]
        %v264 = vld [vmem:[#allocation2 + $0x42] sm:$0xff]
        %v265 = vld [vmem:[#allocation2 + $0x52] sm:$0xff]
        %v266 = vld [vmem:[#allocation2 + $0x62] sm:$0xff]
        %v267 = vld [vmem:[#allocation2 + $0x72] sm:$0xff]
        %276 = vrot.lane.b32.xlu0 %v252, 16
        %v277 = vpop.permute.xlu0 %276
        %278 = vrot.lane.b32.xlu0 %v253, 16
        %v279 = vpop.permute.xlu0 %278
        %280 = vrot.lane.b32.xlu0 %v254, 16
        %v281 = vpop.permute.xlu0 %280
        %282 = vrot.lane.b32.xlu0 %v255, 16
        %v283 = vpop.permute.xlu0 %282
        %284 = vrot.lane.b32.xlu0 %v256, 16
        %v285 = vpop.permute.xlu0 %284
        %286 = vrot.lane.b32.xlu0 %v257, 16
        %v287 = vpop.permute.xlu0 %286
        %288 = vrot.lane.b32.xlu0 %v258, 16
        %v289 = vpop.permute.xlu0 %288
        %290 = vrot.lane.b32.xlu0 %v259, 16
        %v291 = vpop.permute.xlu0 %290
        %308 = vrot.lane.b32.xlu0 %v260, 32
        %v309 = vpop.permute.xlu0 %308
        %310 = vrot.lane.b32.xlu0 %v261, 32
        %v311 = vpop.permute.xlu0 %310
        %312 = vrot.lane.b32.xlu0 %v262, 32
        %v313 = vpop.permute.xlu0 %312
        %314 = vrot.lane.b32.xlu0 %v263, 32
        %v315 = vpop.permute.xlu0 %314
        %316 = vrot.lane.b32.xlu0 %v264, 32
        %v317 = vpop.permute.xlu0 %316
        %318 = vrot.lane.b32.xlu0 %v265, 32
        %v319 = vpop.permute.xlu0 %318
        %320 = vrot.lane.b32.xlu0 %v266, 32
        %v321 = vpop.permute.xlu0 %320
        %322 = vrot.lane.b32.xlu0 %v267, 32
        %v323 = vpop.permute.xlu0 %322
        %v332 = vsel %vm197, %v244, %v277
        %v333 = vsel %vm197, %v245, %v279
        %v334 = vsel %vm197, %v246, %v281
        %v335 = vsel %vm197, %v247, %v283
        %v336 = vsel %vm197, %v248, %v285
        %v337 = vsel %vm197, %v249, %v287
        %v338 = vsel %vm197, %v250, %v289
        %v339 = vsel %vm197, %v251, %v291
        %vm340 = vcmask 261120
        %v341 = vsel %vm340, %v332, %v309
        %v342 = vsel %vm340, %v333, %v311
        %v343 = vsel %vm340, %v334, %v313
        %v344 = vsel %vm340, %v335, %v315
        %v345 = vsel %vm340, %v336, %v317
        %v346 = vsel %vm340, %v337, %v319
        %v347 = vsel %vm340, %v338, %v321
        %v348 = vsel %vm340, %v339, %v323
        %v349 = vpack.c.bf16 %v342, %v341
        %v350 = vpack.c.bf16 %v344, %v343
        %v351 = vpack.c.bf16 %v346, %v345
        %v352 = vpack.c.bf16 %v348, %v347
        %v353 = vld [vmem:[%s1] sm:$0xf]
        %v354 = vld [vmem:[%s1 + $0x4] sm:$0xf]
        %v355 = vld [vmem:[%s1 + $0x8] sm:$0xf]
        %v356 = vld [vmem:[%s1 + $0xc] sm:$0xf]
        %v357 = vld [vmem:[%s1 + $0x10] sm:$0xf]
        %v358 = vld [vmem:[%s1 + $0x14] sm:$0xf]
        %v359 = vld [vmem:[%s235] sm:$0xff]
        %v360 = vld [vmem:[%s235 + $0x10] sm:$0xff]
        %v361 = vld [vmem:[%s235 + $0x20] sm:$0xff]
        %v362 = vld [vmem:[%s235 + $0x30] sm:$0xff]
        %v363 = vld [vmem:[%s235 + $0x40] sm:$0xff]
        %v364 = vld [vmem:[%s235 + $0x50] sm:$0xff]
        %v365 = vld [vmem:[%s235 + $0x60] sm:$0xff]
        %v366 = vld [vmem:[%s235 + $0x70] sm:$0xff]
        %v367 = vld [vmem:[%s235 + $0x1] sm:$0xff]
        %v368 = vld [vmem:[%s235 + $0x11] sm:$0xff]
        %v369 = vld [vmem:[%s235 + $0x21] sm:$0xff]
        %v370 = vld [vmem:[%s235 + $0x31] sm:$0xff]
        %v371 = vld [vmem:[%s235 + $0x41] sm:$0xff]
        %v372 = vld [vmem:[%s235 + $0x51] sm:$0xff]
        %v373 = vld [vmem:[%s235 + $0x61] sm:$0xff]
        %v374 = vld [vmem:[%s235 + $0x71] sm:$0xff]
        %v375 = vld [vmem:[%s235 + $0x2] sm:$0xff]
        %v376 = vld [vmem:[%s235 + $0x12] sm:$0xff]
        %v377 = vld [vmem:[%s235 + $0x22] sm:$0xff]
        %v378 = vld [vmem:[%s235 + $0x32] sm:$0xff]
        %v379 = vld [vmem:[%s235 + $0x42] sm:$0xff]
        %v380 = vld [vmem:[%s235 + $0x52] sm:$0xff]
        %v381 = vld [vmem:[%s235 + $0x62] sm:$0xff]
        %v382 = vld [vmem:[%s235 + $0x72] sm:$0xff]
        %391 = vrot.lane.b32.xlu0 %v367, 16
        %v392 = vpop.permute.xlu0 %391
        %393 = vrot.lane.b32.xlu0 %v368, 16
        %v394 = vpop.permute.xlu0 %393
        %395 = vrot.lane.b32.xlu0 %v369, 16
        %v396 = vpop.permute.xlu0 %395
        %397 = vrot.lane.b32.xlu0 %v370, 16
        %v398 = vpop.permute.xlu0 %397
        %399 = vrot.lane.b32.xlu0 %v371, 16
        %v400 = vpop.permute.xlu0 %399
        %401 = vrot.lane.b32.xlu0 %v372, 16
        %v402 = vpop.permute.xlu0 %401
        %403 = vrot.lane.b32.xlu0 %v373, 16
        %v404 = vpop.permute.xlu0 %403
        %405 = vrot.lane.b32.xlu0 %v374, 16
        %v406 = vpop.permute.xlu0 %405
        %423 = vrot.lane.b32.xlu0 %v375, 32
        %v424 = vpop.permute.xlu0 %423
        %425 = vrot.lane.b32.xlu0 %v376, 32
        %v426 = vpop.permute.xlu0 %425
        %427 = vrot.lane.b32.xlu0 %v377, 32
        %v428 = vpop.permute.xlu0 %427
        %429 = vrot.lane.b32.xlu0 %v378, 32
        %v430 = vpop.permute.xlu0 %429
        %431 = vrot.lane.b32.xlu0 %v379, 32
        %v432 = vpop.permute.xlu0 %431
        %433 = vrot.lane.b32.xlu0 %v380, 32
        %v434 = vpop.permute.xlu0 %433
        %435 = vrot.lane.b32.xlu0 %v381, 32
        %v436 = vpop.permute.xlu0 %435
        %437 = vrot.lane.b32.xlu0 %v382, 32
        %v438 = vpop.permute.xlu0 %437
        %v447 = vsel %vm197, %v359, %v392
        %v448 = vsel %vm197, %v360, %v394
        %v449 = vsel %vm197, %v361, %v396
        %v450 = vsel %vm197, %v362, %v398
        %v451 = vsel %vm197, %v363, %v400
        %v452 = vsel %vm197, %v364, %v402
        %v453 = vsel %vm197, %v365, %v404
        %v454 = vsel %vm197, %v366, %v406
        %v455 = vsel %vm340, %v447, %v424
        %v456 = vsel %vm340, %v448, %v426
        %v457 = vsel %vm340, %v449, %v428
        %v458 = vsel %vm340, %v450, %v430
        %v459 = vsel %vm340, %v451, %v432
        %v460 = vsel %vm340, %v452, %v434
        %v461 = vsel %vm340, %v453, %v436
        %v462 = vsel %vm340, %v454, %v438
        %v463 = vpack.c.bf16 %v456, %v455
        %v464 = vpack.c.bf16 %v458, %v457
        %v465 = vpack.c.bf16 %v460, %v459
        %v466 = vpack.c.bf16 %v462, %v461
        %s467 = scalar_lea.vmem %s1, 24
        %v468 = vld [vmem:[%s467] sm:$0xf]
        %v469 = vld [vmem:[%s467 + $0x4] sm:$0xf]
        %v470 = vld [vmem:[%s467 + $0x8] sm:$0xf]
        %v471 = vld [vmem:[%s467 + $0xc] sm:$0xf]
        %v472 = vld [vmem:[%s467 + $0x10] sm:$0xf]
        %v473 = vld [vmem:[%s467 + $0x14] sm:$0xf]
        %v480 = vunpack.c.l.b16 %v468
        %v481 = vunpack.c.l.b16 %v469
        %v482 = vunpack.c.l.b16 %v470
        %v483 = vunpack.c.l.b16 %v471
        %v484 = vunpack.c.l.b16 %v472
        %v485 = vunpack.c.l.b16 %v473
        %v486 = vpack.c.b16 %v481, %v480
        %v487 = vpack.c.b16 %v483, %v482
        %v488 = vpack.c.b16 %v485, %v484
        %vm492 = vcmask 392192
        %v494 = vsel %vm492, %v463, 0
        %v497 = vsel %vm492, %v464, 0
        %v500 = vsel %vm492, %v465, 0
        %v503 = vsel %vm492, %v466, 0
        %505 = vmatprep.subr.bf16.mxu0 0
        %506 = vmatpush1.bf16.msra.mxu0 0
        %507 = vmatprep.subr.bf16.mxu0 0
        %508 = vmatpush1.bf16.msra.mxu0 0
        %509 = vmatprep.subr.bf16.mxu0 0
        %510 = vmatpush1.bf16.msra.mxu0 0
        %511 = vmatprep.subr.bf16.mxu0 0
        %512 = vmatpush1.bf16.msra.mxu0 0
        %513 = vmatprep.subr.bf16.mxu0 0
        %514 = vmatpush1.bf16.msra.mxu0 0
        %515 = vmatprep.subr.bf16.mxu0 0
        %516 = vmatpush1.bf16.msra.mxu0 %v488
        %517 = vmatprep.subr.bf16.mxu0 0
        %518 = vmatpush1.bf16.msra.mxu0 %v487
        %519 = vmatprep.subr.bf16.mxu0 0
        %520 = vmatpush1.bf16.msra.mxu0 %v486
        %521 = vmatprep.subr.bf16.mxu0 0
        %522 = vmatpush2.bf16.msra.mxu0 0
        %523 = vmatprep.subr.bf16.mxu0 0
        %524 = vmatpush2.bf16.msra.mxu0 0
        %525 = vmatprep.subr.bf16.mxu0 0
        %526 = vmatpush2.bf16.msra.mxu0 0
        %527 = vmatprep.subr.bf16.mxu0 0
        %528 = vmatpush2.bf16.msra.mxu0 0
        %529 = vmatprep.subr.bf16.mxu0 0
        %530 = vmatpush2.bf16.msra.mxu0 0
        %531 = vmatprep.subr.bf16.mxu0 0
        %532 = vmatpush2.bf16.msra.mxu0 0
        %533 = vmatprep.subr.bf16.mxu0 0
        %534 = vmatpush2.bf16.msra.mxu0 0
        %535 = vmatprep.subr.bf16.mxu0 0
        %536 = vmatpush2.bf16.msra.mxu0 0
        %537 = vmatprep.mubr.bf16.mxu0 0
        %538 = vmatmul.mubr.bf16.gmra.mxu0 %v494
        %v539 = vpop.f32.mrf.mxu0
        %v540 = vadd.f32 0.0, %v539
        %v541 = vpop.f32.mrf.mxu0
        %v542 = vpop.f32.mrf.mxu0
        %v543 = vadd.f32 0.0, %v542
        %v544 = vpop.f32.mrf.mxu0
        %545 = vmatprep.mubr.bf16.mxu0 0
        %546 = vmatmul.mubr.bf16.gmra.mxu0 %v497
        %v547 = vpop.f32.mrf.mxu0
        %v548 = vadd.f32 0.0, %v547
        %v549 = vpop.f32.mrf.mxu0
        %v550 = vpop.f32.mrf.mxu0
        %v551 = vadd.f32 0.0, %v550
        %v552 = vpop.f32.mrf.mxu0
        %553 = vmatprep.mubr.bf16.mxu0 0
        %554 = vmatmul.mubr.bf16.gmra.mxu0 %v500
        %v555 = vpop.f32.mrf.mxu0
        %v556 = vadd.f32 0.0, %v555
        %v557 = vpop.f32.mrf.mxu0
        %v558 = vpop.f32.mrf.mxu0
        %v559 = vadd.f32 0.0, %v558
        %v560 = vpop.f32.mrf.mxu0
        %561 = vmatprep.mubr.bf16.mxu0 0
        %562 = vmatmul.mubr.bf16.gmra.mxu0 %v503
        %v563 = vpop.f32.mrf.mxu0
        %v564 = vadd.f32 0.0, %v563
        %v565 = vpop.f32.mrf.mxu0
        %v566 = vpop.f32.mrf.mxu0
        %v567 = vadd.f32 0.0, %v566
        %v568 = vpop.f32.mrf.mxu0
        %569 = vdwg.mxu0
        %v576 = vunpack.c.l.b16 %v353
        %v577 = vunpack.c.l.b16 %v354
        %v578 = vunpack.c.l.b16 %v355
        %v579 = vunpack.c.l.b16 %v356
        %v580 = vunpack.c.l.b16 %v357
        %v581 = vunpack.c.l.b16 %v358
        %v582 = vpack.c.b16 %v577, %v576
        %v583 = vpack.c.b16 %v579, %v578
        %v584 = vpack.c.b16 %v581, %v580
        %v589 = vsel %vm492, %v349, 0
        %v592 = vsel %vm492, %v350, 0
        %v595 = vsel %vm492, %v351, 0
        %v598 = vsel %vm492, %v352, 0
        %600 = vmatprep.subr.bf16.mxu0 0
        %601 = vmatpush1.bf16.msra.mxu0 0
        %602 = vmatprep.subr.bf16.mxu0 0
        %603 = vmatpush1.bf16.msra.mxu0 0
        %604 = vmatprep.subr.bf16.mxu0 0
        %605 = vmatpush1.bf16.msra.mxu0 0
        %606 = vmatprep.subr.bf16.mxu0 0
        %607 = vmatpush1.bf16.msra.mxu0 0
        %608 = vmatprep.subr.bf16.mxu0 0
        %609 = vmatpush1.bf16.msra.mxu0 0
        %610 = vmatprep.subr.bf16.mxu0 0
        %611 = vmatpush1.bf16.msra.mxu0 %v584
        %612 = vmatprep.subr.bf16.mxu0 0
        %613 = vmatpush1.bf16.msra.mxu0 %v583
        %614 = vmatprep.subr.bf16.mxu0 0
        %615 = vmatpush1.bf16.msra.mxu0 %v582
        %616 = vmatprep.subr.bf16.mxu0 0
        %617 = vmatpush2.bf16.msra.mxu0 0
        %618 = vmatprep.subr.bf16.mxu0 0
        %619 = vmatpush2.bf16.msra.mxu0 0
        %620 = vmatprep.subr.bf16.mxu0 0
        %621 = vmatpush2.bf16.msra.mxu0 0
        %622 = vmatprep.subr.bf16.mxu0 0
        %623 = vmatpush2.bf16.msra.mxu0 0
        %624 = vmatprep.subr.bf16.mxu0 0
        %625 = vmatpush2.bf16.msra.mxu0 0
        %626 = vmatprep.subr.bf16.mxu0 0
        %627 = vmatpush2.bf16.msra.mxu0 0
        %628 = vmatprep.subr.bf16.mxu0 0
        %629 = vmatpush2.bf16.msra.mxu0 0
        %630 = vmatprep.subr.bf16.mxu0 0
        %631 = vmatpush2.bf16.msra.mxu0 0
        %632 = vmatprep.mubr.bf16.mxu0 0
        %633 = vmatmul.mubr.bf16.gmra.mxu0 %v589
        %v634 = vpop.f32.mrf.mxu0
        %v635 = vadd.f32 %v540, %v634
        %v636 = vpop.f32.mrf.mxu0
        %v637 = vpop.f32.mrf.mxu0
        %v638 = vadd.f32 %v543, %v637
        %v639 = vpop.f32.mrf.mxu0
        %640 = vmatprep.mubr.bf16.mxu0 0
        %641 = vmatmul.mubr.bf16.gmra.mxu0 %v592
        %v642 = vpop.f32.mrf.mxu0
        %v643 = vadd.f32 %v548, %v642
        %v644 = vpop.f32.mrf.mxu0
        %v645 = vpop.f32.mrf.mxu0
        %v646 = vadd.f32 %v551, %v645
        %v647 = vpop.f32.mrf.mxu0
        %648 = vmatprep.mubr.bf16.mxu0 0
        %649 = vmatmul.mubr.bf16.gmra.mxu0 %v595
        %v650 = vpop.f32.mrf.mxu0
        %v651 = vadd.f32 %v556, %v650
        %v652 = vpop.f32.mrf.mxu0
        %v653 = vpop.f32.mrf.mxu0
        %v654 = vadd.f32 %v559, %v653
        %v655 = vpop.f32.mrf.mxu0
        %656 = vmatprep.mubr.bf16.mxu0 0
        %657 = vmatmul.mubr.bf16.gmra.mxu0 %v598
        %v658 = vpop.f32.mrf.mxu0
        %v659 = vadd.f32 %v564, %v658
        %v660 = vpop.f32.mrf.mxu0
        %v661 = vpop.f32.mrf.mxu0
        %v662 = vadd.f32 %v567, %v661
        %v663 = vpop.f32.mrf.mxu0
        %664 = vdwg.mxu0
        %s665 = scalar_lea.vmem [#allocation2], 32
        %v666 = vld [vmem:[%s665] sm:$0xff]
        %v667 = vld [vmem:[%s665 + $0x10] sm:$0xff]
        %v668 = vld [vmem:[%s665 + $0x20] sm:$0xff]
        %v669 = vld [vmem:[%s665 + $0x30] sm:$0xff]
        %v670 = vld [vmem:[%s665 + $0x40] sm:$0xff]
        %v671 = vld [vmem:[%s665 + $0x50] sm:$0xff]
        %v672 = vld [vmem:[%s665 + $0x60] sm:$0xff]
        %v673 = vld [vmem:[%s665 + $0x70] sm:$0xff]
        %v674 = vld [vmem:[%s665 + $0x1] sm:$0xff]
        %v675 = vld [vmem:[%s665 + $0x11] sm:$0xff]
        %v676 = vld [vmem:[%s665 + $0x21] sm:$0xff]
        %v677 = vld [vmem:[%s665 + $0x31] sm:$0xff]
        %v678 = vld [vmem:[%s665 + $0x41] sm:$0xff]
        %v679 = vld [vmem:[%s665 + $0x51] sm:$0xff]
        %v680 = vld [vmem:[%s665 + $0x61] sm:$0xff]
        %v681 = vld [vmem:[%s665 + $0x71] sm:$0xff]
        %v682 = vld [vmem:[%s665 + $0x2] sm:$0xff]
        %v683 = vld [vmem:[%s665 + $0x12] sm:$0xff]
        %v684 = vld [vmem:[%s665 + $0x22] sm:$0xff]
        %v685 = vld [vmem:[%s665 + $0x32] sm:$0xff]
        %v686 = vld [vmem:[%s665 + $0x42] sm:$0xff]
        %v687 = vld [vmem:[%s665 + $0x52] sm:$0xff]
        %v688 = vld [vmem:[%s665 + $0x62] sm:$0xff]
        %v689 = vld [vmem:[%s665 + $0x72] sm:$0xff]
        %698 = vrot.lane.b32.xlu0 %v674, 16
        %v699 = vpop.permute.xlu0 %698
        %700 = vrot.lane.b32.xlu0 %v675, 16
        %v701 = vpop.permute.xlu0 %700
        %702 = vrot.lane.b32.xlu0 %v676, 16
        %v703 = vpop.permute.xlu0 %702
        %704 = vrot.lane.b32.xlu0 %v677, 16
        %v705 = vpop.permute.xlu0 %704
        %706 = vrot.lane.b32.xlu0 %v678, 16
        %v707 = vpop.permute.xlu0 %706
        %708 = vrot.lane.b32.xlu0 %v679, 16
        %v709 = vpop.permute.xlu0 %708
        %710 = vrot.lane.b32.xlu0 %v680, 16
        %v711 = vpop.permute.xlu0 %710
        %712 = vrot.lane.b32.xlu0 %v681, 16
        %v713 = vpop.permute.xlu0 %712
        %730 = vrot.lane.b32.xlu0 %v682, 32
        %v731 = vpop.permute.xlu0 %730
        %732 = vrot.lane.b32.xlu0 %v683, 32
        %v733 = vpop.permute.xlu0 %732
        %734 = vrot.lane.b32.xlu0 %v684, 32
        %v735 = vpop.permute.xlu0 %734
        %736 = vrot.lane.b32.xlu0 %v685, 32
        %v737 = vpop.permute.xlu0 %736
        %738 = vrot.lane.b32.xlu0 %v686, 32
        %v739 = vpop.permute.xlu0 %738
        %740 = vrot.lane.b32.xlu0 %v687, 32
        %v741 = vpop.permute.xlu0 %740
        %742 = vrot.lane.b32.xlu0 %v688, 32
        %v743 = vpop.permute.xlu0 %742
        %744 = vrot.lane.b32.xlu0 %v689, 32
        %v745 = vpop.permute.xlu0 %744
        %v754 = vsel %vm197, %v666, %v699
        %v755 = vsel %vm197, %v667, %v701
        %v756 = vsel %vm197, %v668, %v703
        %v757 = vsel %vm197, %v669, %v705
        %v758 = vsel %vm197, %v670, %v707
        %v759 = vsel %vm197, %v671, %v709
        %v760 = vsel %vm197, %v672, %v711
        %v761 = vsel %vm197, %v673, %v713
        %v762 = vsel %vm340, %v754, %v731
        %v763 = vsel %vm340, %v755, %v733
        %v764 = vsel %vm340, %v756, %v735
        %v765 = vsel %vm340, %v757, %v737
        %v766 = vsel %vm340, %v758, %v739
        %v767 = vsel %vm340, %v759, %v741
        %v768 = vsel %vm340, %v760, %v743
        %v769 = vsel %vm340, %v761, %v745
        %v770 = vpack.c.bf16 %v763, %v762
        %v771 = vpack.c.bf16 %v765, %v764
        %v772 = vpack.c.bf16 %v767, %v766
        %v773 = vpack.c.bf16 %v769, %v768
        %s774 = scalar_lea.vmem %s1, 48
        %v775 = vld [vmem:[%s774] sm:$0xf]
        %v776 = vld [vmem:[%s774 + $0x4] sm:$0xf]
        %v777 = vld [vmem:[%s774 + $0x8] sm:$0xf]
        %v778 = vld [vmem:[%s774 + $0xc] sm:$0xf]
        %v779 = vld [vmem:[%s774 + $0x10] sm:$0xf]
        %v780 = vld [vmem:[%s774 + $0x14] sm:$0xf]
        %v787 = vunpack.c.l.b16 %v775
        %v788 = vunpack.c.l.b16 %v776
        %v789 = vunpack.c.l.b16 %v777
        %v790 = vunpack.c.l.b16 %v778
        %v791 = vunpack.c.l.b16 %v779
        %v792 = vunpack.c.l.b16 %v780
        %v793 = vpack.c.b16 %v788, %v787
        %v794 = vpack.c.b16 %v790, %v789
        %v795 = vpack.c.b16 %v792, %v791
        %v800 = vsel %vm492, %v770, 0
        %v803 = vsel %vm492, %v771, 0
        %v806 = vsel %vm492, %v772, 0
        %v809 = vsel %vm492, %v773, 0
        %811 = vmatprep.subr.bf16.mxu0 0
        %812 = vmatpush1.bf16.msra.mxu0 0
        %813 = vmatprep.subr.bf16.mxu0 0
        %814 = vmatpush1.bf16.msra.mxu0 0
        %815 = vmatprep.subr.bf16.mxu0 0
        %816 = vmatpush1.bf16.msra.mxu0 0
        %817 = vmatprep.subr.bf16.mxu0 0
        %818 = vmatpush1.bf16.msra.mxu0 0
        %819 = vmatprep.subr.bf16.mxu0 0
        %820 = vmatpush1.bf16.msra.mxu0 0
        %821 = vmatprep.subr.bf16.mxu0 0
        %822 = vmatpush1.bf16.msra.mxu0 %v795
        %823 = vmatprep.subr.bf16.mxu0 0
        %824 = vmatpush1.bf16.msra.mxu0 %v794
        %825 = vmatprep.subr.bf16.mxu0 0
        %826 = vmatpush1.bf16.msra.mxu0 %v793
        %827 = vmatprep.subr.bf16.mxu0 0
        %828 = vmatpush2.bf16.msra.mxu0 0
        %829 = vmatprep.subr.bf16.mxu0 0
        %830 = vmatpush2.bf16.msra.mxu0 0
        %831 = vmatprep.subr.bf16.mxu0 0
        %832 = vmatpush2.bf16.msra.mxu0 0
        %833 = vmatprep.subr.bf16.mxu0 0
        %834 = vmatpush2.bf16.msra.mxu0 0
        %835 = vmatprep.subr.bf16.mxu0 0
        %836 = vmatpush2.bf16.msra.mxu0 0
        %837 = vmatprep.subr.bf16.mxu0 0
        %838 = vmatpush2.bf16.msra.mxu0 0
        %839 = vmatprep.subr.bf16.mxu0 0
        %840 = vmatpush2.bf16.msra.mxu0 0
        %841 = vmatprep.subr.bf16.mxu0 0
        %842 = vmatpush2.bf16.msra.mxu0 0
        %843 = vmatprep.mubr.bf16.mxu0 0
        %844 = vmatmul.mubr.bf16.gmra.mxu0 %v800
        %v845 = vpop.f32.mrf.mxu0
        %v846 = vadd.f32 0.0, %v845
        %v847 = vpop.f32.mrf.mxu0
        %v848 = vpop.f32.mrf.mxu0
        %v849 = vadd.f32 0.0, %v848
        %v850 = vpop.f32.mrf.mxu0
        %851 = vmatprep.mubr.bf16.mxu0 0
        %852 = vmatmul.mubr.bf16.gmra.mxu0 %v803
        %v853 = vpop.f32.mrf.mxu0
        %v854 = vadd.f32 0.0, %v853
        %v855 = vpop.f32.mrf.mxu0
        %v856 = vpop.f32.mrf.mxu0
        %v857 = vadd.f32 0.0, %v856
        %v858 = vpop.f32.mrf.mxu0
        %859 = vmatprep.mubr.bf16.mxu0 0
        %860 = vmatmul.mubr.bf16.gmra.mxu0 %v806
        %v861 = vpop.f32.mrf.mxu0
        %v862 = vadd.f32 0.0, %v861
        %v863 = vpop.f32.mrf.mxu0
        %v864 = vpop.f32.mrf.mxu0
        %v865 = vadd.f32 0.0, %v864
        %v866 = vpop.f32.mrf.mxu0
        %867 = vmatprep.mubr.bf16.mxu0 0
        %868 = vmatmul.mubr.bf16.gmra.mxu0 %v809
        %v869 = vpop.f32.mrf.mxu0
        %v870 = vadd.f32 0.0, %v869
        %v871 = vpop.f32.mrf.mxu0
        %v872 = vpop.f32.mrf.mxu0
        %v873 = vadd.f32 0.0, %v872
        %v874 = vpop.f32.mrf.mxu0
        %875 = vdwg.mxu0
        %v876 = vadd.f32 %v635, %v846
        %v877 = vadd.f32 %v638, %v849
        %v878 = vadd.f32 %v643, %v854
        %v879 = vadd.f32 %v646, %v857
        %v880 = vadd.f32 %v651, %v862
        %v881 = vadd.f32 %v654, %v865
        %v882 = vadd.f32 %v659, %v870
        %v883 = vadd.f32 %v662, %v873
        %v884 = vld [vmem:[%s2] sm:$0x1]
        %v886 = vlaneseq
        %v887 = vshrl.u32 %v886, 7
        %v888 = vsub.s32 0, %v887
        %v889 = vrot.slane %v884, %v888
        %v891 = vmul.f32 %v876, %v889
        %v892 = vmul.f32 %v877, %v889
        %v893 = vmul.f32 %v878, %v889
        %v894 = vmul.f32 %v879, %v889
        %v895 = vmul.f32 %v880, %v889
        %v896 = vmul.f32 %v881, %v889
        %v897 = vmul.f32 %v882, %v889
        %v898 = vmul.f32 %v883, %v889
        %v899 = vld [vmem:[%s3] sm:$0x1]
        %v901 = vlaneseq
        %v902 = vshrl.u32 %v901, 7
        %v903 = vsub.s32 0, %v902
        %v904 = vrot.slane %v899, %v903
        %v906 = vadd.f32 %v891, %v904
        %v907 = vadd.f32 %v892, %v904
        %v908 = vadd.f32 %v893, %v904
        %v909 = vadd.f32 %v894, %v904
        %v910 = vadd.f32 %v895, %v904
        %v911 = vadd.f32 %v896, %v904
        %v912 = vadd.f32 %v897, %v904
        %v913 = vadd.f32 %v898, %v904
        %v914 = vmax.f32 %v906, 0.0
        %v915 = vmax.f32 %v907, 0.0
        %v916 = vmax.f32 %v908, 0.0
        %v917 = vmax.f32 %v909, 0.0
        %v918 = vmax.f32 %v910, 0.0
        %v919 = vmax.f32 %v911, 0.0
        %v920 = vmax.f32 %v912, 0.0
        %v921 = vmax.f32 %v913, 0.0
        %v922 = vpack.c.bf16 %v914, %v914
        %v923 = vpack.c.bf16 %v915, %v915
        %v924 = vpack.c.bf16 %v916, %v916
        %v925 = vpack.c.bf16 %v917, %v917
        %v926 = vpack.c.bf16 %v918, %v918
        %v927 = vpack.c.bf16 %v919, %v919
        %v928 = vpack.c.bf16 %v920, %v920
        %v929 = vpack.c.bf16 %v921, %v921
        %vm930 = vcmask 257024
        %931 = vst.msk [vmem:[%s190] sm:$0xf] %vm930, %v922
        %932 = vst.msk [vmem:[%s190 + $0x4] sm:$0xf] %vm930, %v923
        %933 = vst.msk [vmem:[%s190 + $0x8] sm:$0xf] %vm930, %v924
        %934 = vst.msk [vmem:[%s190 + $0xc] sm:$0xf] %vm930, %v925
        %935 = vst.msk [vmem:[%s190 + $0x10] sm:$0xf] %vm930, %v926
        %936 = vst.msk [vmem:[%s190 + $0x14] sm:$0xf] %vm930, %v927
        %937 = vst.msk [vmem:[%s190 + $0x18] sm:$0xf] %vm930, %v928
        %938 = vst.msk [vmem:[%s190 + $0x1c] sm:$0xf] %vm930, %v929
        %s939 = sand.u32 %s115, 1
        %s940 = scalar_lea.sflag [#allocation4], %s939
        %s941 = sand.u32 %s115, 1
        %s942 = smul.addr %s941, 32
        %s943 = scalar_lea.vmem [#allocation3], %s942
        // Predicated region
        $region37: #{tpu_custom_call.1} parent=35 // pred_check
          %p944 = pneg %p125
        $region38: #{tpu_custom_call.1} parent=35 // pred_check_branch
          %946 = sbr.rel (%p944) target = $region40
        $region39: #{tpu_custom_call.1} parent=35 // pred_region
          %s948 = ssub.s32 512, 512
          %949 = vsyncadd %s940, %s948
          %s950 = smul.addr %s18, 8
          %s951 = smul.addr %s950, 64
          %s952 = scalar_lea.hbm %s4, %s951
          %s953 = sshll.u32 %s943, 4
          %s954 = int_to_ptr.vmem [resolvable:$true] %s953
          %959 = dma.vmem_to_hbm [thread:$0]  %s954, 512, %s952, %s940, 64, 64, 4
        $region40: #{tpu_custom_call.1} parent=35 // pred_fallthru
          _
      $region36: #{tpu_custom_call.1} parent=5 // pred_fallthru
        _
      %p960 = scmp.le.s32.totalorder 2, %s13
      // Predicated region
      $region41: #{tpu_custom_call.1} parent=5 // pred_check
        %p961 = pneg %p960
      $region42: #{tpu_custom_call.1} parent=5 // pred_check_branch
        %963 = sbr.rel (%p961) target = $region44
      $region43: #{tpu_custom_call.1} parent=5 // pred_region
        %s964 = ssub.s32 %s13, 2
        // Predicated region
        $region45: #{tpu_custom_call.1} parent=43 // pred_check
          %p965 = pneg %p131
        $region46: #{tpu_custom_call.1} parent=43 // pred_check_branch
          %967 = sbr.rel (%p965) target = $region48
        $region47: #{tpu_custom_call.1} parent=43 // pred_region
          %s968 = sand.u32 %s116, 1
          %s969 = scalar_lea.sflag [#allocation4], %s968
          %s970 = sand.u32 %s116, 1
          %s971 = smul.addr %s970, 32
          %s972 = scalar_lea.vmem [#allocation3], %s971
          %973 = dma.done %s969, 512
        $region48: #{tpu_custom_call.1} parent=43 // pred_fallthru
          _
      $region44: #{tpu_custom_call.1} parent=5 // pred_fallthru
        _
    $region6: #{tpu_custom_call.1} parent=1 // loop_footer
      %s17 = sadd.s32 1, %s13
    $region7: #{tpu_custom_call.1} parent=1 // loop_footer_branch
      %12 = sbr.rel target = $region3
    $region8: #{tpu_custom_call.1} parent=1 // loop_exit
      _
    %974 = vsyncpa [#allocation4], 1
    %s975 = scalar_lea.sflag [#allocation4], 1
    %976 = vsyncpa %s975, 1

</llo_original>
